<compile_context>
chip_gen: v6e
topology: v6e:2x2x1
jax: 0.10.0
libtpu: 0.0.40
codegen_flags: <defaults>
</compile_context>

<pallas_src>
import functools

import jax
import jax.numpy as jnp
from jax import lax
from jax.experimental import pallas as pl
from jax.experimental.pallas import tpu as pltpu


def _round_up(x, m):
    return ((x + m - 1) // m) * m


# ------------- Pass 1: accumulate colsum(A) and Gram matrix A^T A over M tiles -------
def _stats_kernel(a_ref, colsum_ref, gram_ref):
    @pl.when(pl.program_id(0) == 0)
    def _():
        colsum_ref[...] = jnp.zeros_like(colsum_ref)
        gram_ref[...] = jnp.zeros_like(gram_ref)

    a = a_ref[...]                                              # (TM, K)
    colsum_ref[...] += jnp.sum(a.astype(jnp.float32), axis=0, keepdims=True)
    gram_ref[...] += lax.dot_general(                           # A^T A on the MXU
        a, a, (((0,), (0,)), ((), ())), preferred_element_type=jnp.float32)


# ------------- Pass 2: conv-as-matmul + folded BN (scale/shift) + ReLU ----------------
def _conv_bn_relu_kernel(a_ref, w_ref, scale_ref, shift_ref, o_ref, *, relu):
    y = jnp.dot(a_ref[...], w_ref[...], preferred_element_type=jnp.float32)  # (TM, CP)
    y = y * scale_ref[...] + shift_ref[...]                     # single FMA epilogue
    if relu:
        y = jnp.maximum(y, 0.0)
    o_ref[...] = y.astype(o_ref.dtype)


def basic_conv(x_nchw, weight_oihw, gamma, beta, *, stride=1, padding=0, dilation=1,
               eps=1e-5, bn=True, relu=True, compute_dtype=jnp.float32):
    """Fused Conv2d(bias=False, groups=1) + BatchNorm2d(training batch stats) + ReLU.

    compute_dtype: dtype of the matmul operands (pass jnp.bfloat16 to double MXU rate
    and halve A's HBM/VMEM footprint; accumulation is always f32).
    """
    N, Cin, H, W = x_nchw.shape
    Cout, Cin_w, KH, KW = weight_oihw.shape
    assert Cin == Cin_w, "groups != 1 not supported"  # TODO(synk): grouped conv

    H_out = (H + 2 * padding - dilation * (KH - 1) - 1) // stride + 1
    W_out = (W + 2 * padding - dilation * (KW - 1) - 1) // stride + 1
    M = N * H_out * W_out
    K = KH * KW * Cin
    CP = _round_up(Cout, 128)                 # lane-dense output stores

    # ---- glue: NCHW -> NHWC, pad, im2col (kh outer, kw, cin inner) ----
    # TODO(synk): fold patch extraction into the kernel (shifted-window dots) to remove
    # the KH*KW read amplification of im2col.
    x = jnp.transpose(x_nchw, (0, 2, 3, 1))
    x = jnp.pad(x, ((0, 0), (padding, padding), (padding, padding), (0, 0)))
    taps = []
    for kh in range(KH):
        for kw in range(KW):
            h0 = kh * dilation
            w0 = kw * dilation
            taps.append(x[:, h0:h0 + (H_out - 1) * stride + 1:stride,
                          w0:w0 + (W_out - 1) * stride + 1:stride, :])
    A = jnp.stack(taps, axis=3).reshape(M, K).astype(compute_dtype)

    # Tile over M: TM multiple of 8, sized so the double-buffered working set stays
    # well inside the scoped-VMEM default on every generation (incl. v7x's 64 MiB).
    in_bytes = jnp.dtype(compute_dtype).itemsize
    tm = min(512, _round_up(M, 8))
    while tm > 8 and (2 * tm * K * in_bytes + 2 * tm * CP * 4 + K * CP * in_bytes) > (8 << 20):
        tm //= 2
    tm = max(8, (tm // 8) * 8)
    Mp = _round_up(M, tm)
    grid = (Mp // tm,)
    if Mp != M:
        # zero rows contribute nothing to colsum / Gram; sliced off after pass 2
        A = jnp.pad(A, ((0, Mp - M), (0, 0)))

    # PyTorch weight (Cout, Cin, KH, KW) -> (KH, KW, Cin, Cout) -> (K, Cout) -> pad CP
    w_f32 = jnp.transpose(weight_oihw, (2, 3, 1, 0)).reshape(K, Cout).astype(jnp.float32)
    w_f32 = jnp.pad(w_f32, ((0, 0), (0, CP - Cout)))
    w_mat = w_f32.astype(compute_dtype)

    if bn:
        # ---- pass 1: per-channel stat building blocks (tiled, accumulator outputs) ----
        colsum, gram = pl.pallas_call(
            _stats_kernel,
            out_shape=(jax.ShapeDtypeStruct((1, K), jnp.float32),
                       jax.ShapeDtypeStruct((K, K), jnp.float32)),
            grid=grid,
            in_specs=[pl.BlockSpec((tm, K), lambda i: (i, 0))],
            out_specs=(pl.BlockSpec((1, K), lambda i: (0, 0)),
                       pl.BlockSpec((K, K), lambda i: (0, 0))),
            compiler_params=pltpu.CompilerParams(
                dimension_semantics=("arbitrary",),
                vmem_limit_bytes=32 * 1024 * 1024),
        )(A)

        # ---- tiny XLA glue: batch stats -> folded per-channel scale/shift ----
        m = jnp.float32(M)
        mean = (colsum @ w_f32) / m                                   # (1, CP)
        ey2 = jnp.sum(w_f32 * (gram @ w_f32), axis=0, keepdims=True) / m
        var = jnp.maximum(ey2 - mean * mean, 0.0)                     # biased batch var
        inv = lax.rsqrt(var + eps)
        gamma_p = jnp.pad(gamma.reshape(1, Cout).astype(jnp.float32),
                          ((0, 0), (0, CP - Cout)))
        beta_p = jnp.pad(beta.reshape(1, Cout).astype(jnp.float32),
                         ((0, 0), (0, CP - Cout)))
        scale = gamma_p * inv
        shift = beta_p - mean * scale
        # TODO(synk): PyTorch training-mode BN also updates running_mean/running_var
        # (momentum=0.01); forward output does not depend on them, but expose mean/var
        # to the caller if those buffers are needed.
    else:
        scale = jnp.ones((1, CP), jnp.float32)
        shift = jnp.zeros((1, CP), jnp.float32)

    # ---- pass 2: y = A @ W, y*scale + shift, ReLU; lane-dense (tm, CP) stores ----
    out_flat = pl.pallas_call(
        functools.partial(_conv_bn_relu_kernel, relu=relu),
        out_shape=jax.ShapeDtypeStruct((Mp, CP), jnp.float32),
        grid=grid,
        in_specs=[pl.BlockSpec((tm, K), lambda i: (i, 0)),
                  pl.BlockSpec((K, CP), lambda i: (0, 0)),
                  pl.BlockSpec((1, CP), lambda i: (0, 0)),
                  pl.BlockSpec((1, CP), lambda i: (0, 0))],
        out_specs=pl.BlockSpec((tm, CP), lambda i: (i, 0)),
        compiler_params=pltpu.CompilerParams(
            dimension_semantics=("parallel",),        # shards M across v7x's 2 TCs
            vmem_limit_bytes=32 * 1024 * 1024),
    )(A, w_mat, scale, shift)

    # (Mp, CP) -> (M, Cout) -> NHWC -> NCHW
    out = out_flat[:M, :Cout].reshape(N, H_out, W_out, Cout)
    return jnp.transpose(out, (0, 3, 1, 2))


def _reference(x_nchw, weight, gamma, beta, *, stride, padding, dilation, eps=1e-5):
    y = jax.lax.conv_general_dilated(
        x_nchw, weight,
        window_strides=(stride, stride),
        padding=[(padding, padding), (padding, padding)],
        rhs_dilation=(dilation, dilation),
        dimension_numbers=("NCHW", "OIHW", "NCHW"),
    )
    mean = jnp.mean(y, axis=(0, 2, 3), keepdims=True)
    var = jnp.mean((y - mean) ** 2, axis=(0, 2, 3), keepdims=True)
    y = (y - mean) * jax.lax.rsqrt(var + eps)
    y = y * gamma.reshape(1, -1, 1, 1) + beta.reshape(1, -1, 1, 1)
    return jnp.maximum(y, 0.0)


if __name__ == "__main__":
    # BasicConv(in_planes=4, out_planes=8, kernel_size=3, stride=1, padding=1)
    N, Cin, H, W = 2, 4, 16, 16
    Cout, KH, KW = 8, 3, 3
    stride, padding, dilation = 1, 1, 1

    key = jax.random.PRNGKey(0)
    kx, kw, kg, kb = jax.random.split(key, 4)
    x = jax.random.normal(kx, (N, Cin, H, W), dtype=jnp.float32)
    weight = 0.1 * jax.random.normal(kw, (Cout, Cin, KH, KW), dtype=jnp.float32)
    gamma = 1.0 + 0.1 * jax.random.normal(kg, (Cout,), dtype=jnp.float32)
    beta = 0.1 * jax.random.normal(kb, (Cout,), dtype=jnp.float32)

    out = basic_conv(x, weight, gamma, beta,
                     stride=stride, padding=padding, dilation=dilation)
    out = jax.block_until_ready(out)

    ref = _reference(x, weight, gamma, beta,
                     stride=stride, padding=padding, dilation=dilation)
    assert out.shape == (N, Cout, H, W)
    assert jnp.allclose(out, ref, atol=2e-4, rtol=2e-4), "mismatch vs reference"

    print("KERNEL_OK")
</pallas_src>

<mosaic_0001>
module attributes {stable_mosaic.version = 11 : i64} {
  func.func @_stats_kernel(%arg0: i32, %arg1: memref<512x36xf32, #tpu.memory_space<vmem>>, %arg2: memref<1x36xf32, #tpu.memory_space<vmem>>, %arg3: memref<36x36xf32, #tpu.memory_space<vmem>>) attributes {dimension_semantics = [#tpu.dimension_semantics<arbitrary>], iteration_bounds = array<i64: 1>, scalar_prefetch = 0 : i64, scratch_operands = 0 : i64, tpu.core_type = #tpu.core_type<tc>, window_params = [{transform_indices = @transform_0, window_bounds = array<i64: 512, 36>}, {pipeline_mode = #tpu.pipeline_mode<synchronous>, transform_indices = @transform_1, window_bounds = array<i64: 1, 36>}, {pipeline_mode = #tpu.pipeline_mode<synchronous>, transform_indices = @transform_2, window_bounds = array<i64: 36, 36>}]} {
    %c0_i32 = arith.constant 0 : i32
    %0 = arith.cmpi eq, %arg0, %c0_i32 : i32
    %1 = arith.extui %0 : i1 to i32
    %c0_i32_0 = arith.constant 0 : i32
    %2 = arith.cmpi ne, %1, %c0_i32_0 : i32
    scf.if %2 {
      %cst_11 = arith.constant 0.000000e+00 : f32
      %13 = vector.broadcast %cst_11 : f32 to vector<1x36xf32>
      %c0_12 = arith.constant 0 : index
      %c0_13 = arith.constant 0 : index
      %14 = vector.load %arg2[%c0_12, %c0_13] : memref<1x36xf32, #tpu.memory_space<vmem>>, vector<1x36xf32>
      tpu.vector_store %arg2[%c0_12, %c0_13], %13 {strides = array<i32>} : memref<1x36xf32, #tpu.memory_space<vmem>>, vector<1x36xf32>,
      %cst_14 = arith.constant 0.000000e+00 : f32
      %15 = vector.broadcast %cst_14 : f32 to vector<36x36xf32>
      %c0_15 = arith.constant 0 : index
      %c0_16 = arith.constant 0 : index
      %16 = vector.load %arg3[%c0_15, %c0_16] : memref<36x36xf32, #tpu.memory_space<vmem>>, vector<36x36xf32>
      tpu.vector_store %arg3[%c0_15, %c0_16], %15 {strides = array<i32>} : memref<36x36xf32, #tpu.memory_space<vmem>>, vector<36x36xf32>,
    } else {
    }
    %c0 = arith.constant 0 : index
    %c0_1 = arith.constant 0 : index
    %3 = vector.load %arg1[%c0, %c0_1] : memref<512x36xf32, #tpu.memory_space<vmem>>, vector<512x36xf32>
    %c0_2 = arith.constant 0 : index
    %c0_3 = arith.constant 0 : index
    %4 = vector.load %arg2[%c0_2, %c0_3] : memref<1x36xf32, #tpu.memory_space<vmem>>, vector<1x36xf32>
    %cst = arith.constant dense<0.000000e+00> : vector<36xf32>
    %5 = vector.multi_reduction <add>, %3, %cst [0] : vector<512x36xf32> to vector<36xf32>
    %6 = vector.shape_cast %5 : vector<36xf32> to vector<1x36xf32>
    %7 = arith.addf %4, %6 : vector<1x36xf32>
    %c0_4 = arith.constant 0 : index
    %c0_5 = arith.constant 0 : index
    %8 = vector.load %arg2[%c0_4, %c0_5] : memref<1x36xf32, #tpu.memory_space<vmem>>, vector<1x36xf32>
    tpu.vector_store %arg2[%c0_4, %c0_5], %7 {strides = array<i32>} : memref<1x36xf32, #tpu.memory_space<vmem>>, vector<1x36xf32>,
    %c0_6 = arith.constant 0 : index
    %c0_7 = arith.constant 0 : index
    %9 = vector.load %arg3[%c0_6, %c0_7] : memref<36x36xf32, #tpu.memory_space<vmem>>, vector<36x36xf32>
    %cst_8 = arith.constant dense<0.000000e+00> : vector<36x36xf32>
    %10 = tpu.matmul %3, %3, %cst_8 {dimension_numbers = #tpu.dot_dimension_numbers<[0], [0], [1], [1], [0, 1, 1, 1], [], []>} : vector<512x36xf32>, vector<512x36xf32>, vector<36x36xf32> -> vector<36x36xf32>
    %11 = arith.addf %9, %10 : vector<36x36xf32>
    %c0_9 = arith.constant 0 : index
    %c0_10 = arith.constant 0 : index
    %12 = vector.load %arg3[%c0_9, %c0_10] : memref<36x36xf32, #tpu.memory_space<vmem>>, vector<36x36xf32>
    tpu.vector_store %arg3[%c0_9, %c0_10], %11 {strides = array<i32>} : memref<36x36xf32, #tpu.memory_space<vmem>>, vector<36x36xf32>,
    return
  }
  func.func @transform_0(%arg0: i32) -> (i32, i32) {
    %c0_i32 = arith.constant 0 : i32
    %c0_i32_0 = arith.constant 0 : i32
    return %arg0, %c0_i32 : i32, i32
  }
  func.func @transform_1(%arg0: i32) -> (i32, i32) {
    %c0_i32 = arith.constant 0 : i32
    %c0_i32_0 = arith.constant 0 : i32
    %c0_i32_1 = arith.constant 0 : i32
    return %c0_i32, %c0_i32_0 : i32, i32
  }
  func.func @transform_2(%arg0: i32) -> (i32, i32) {
    %c0_i32 = arith.constant 0 : i32
    %c0_i32_0 = arith.constant 0 : i32
    %c0_i32_1 = arith.constant 0 : i32
    return %c0_i32, %c0_i32_0 : i32, i32
  }
}

</mosaic_0001>

<llo_original>
// kernel: tpu_custom_call.1
$region0: #{tpu_custom_call.1}
  #allocation0 [shape = 'u32[]', space=smem, size = 0x4, offset = 0x4, fixed_abs, tag = 'smem constant byte address 0x4 - core index']
  #allocation1 [shape = 'u32[144,128]{1,0:T(1,128)}', space=vmem, size = 0x12000, scoped, tag = 'internal scratch']
  %s0 = inlined_call_operand.vmem [shape: f32[512,36], index: 0, kind: input, shape index: {}]
  %s1 = inlined_call_operand.hbm [shape: f32[1,36], index: 1, kind: output, shape index: {0}]
  %s2 = inlined_call_operand.hbm [shape: f32[36,36], index: 2, kind: output, shape index: {1}]
  %3 = xla_tuple %s1, %s2
  %s4 = sld [smem:[#allocation0]]
  $region26: #{tpu_custom_call.1} parent=0
    _
  %s6 = ssub.s32 1, %s4
  %s7 = scalar_select 0, %s6, %s4
  $region1: #{tpu_custom_call.1} parent=0
    #allocation2 [shape = 'u8[512]{0}', space=vmem, size = 0x400, scoped, tag = 'output window, operand 0, single buffered']
    #allocation3 [shape = 's32[1]{0}', space=sflag, size = 0x4, scoped, tag = 'scoped memory for tpu_custom_call.1']
    #allocation4 [shape = 'u8[20480]{0}', space=vmem, size = 0x5000, scoped, tag = 'output window, operand 1, single buffered']
    #allocation5 [shape = 's32[1]{0}', space=sflag, size = 0x4, scoped, tag = 'scoped memory for tpu_custom_call.1']
    %8 = vsyncpa [#allocation3], 0
    %9 = vsyncpa [#allocation5], 0
    // Predicated region
    $region2: #{tpu_custom_call.1} parent=1 // pred_check
      _
    $region3: #{tpu_custom_call.1} parent=1 // pred_check_branch
      %11 = sbr.rel (0) target = $region5
    $region4: #{tpu_custom_call.1} parent=1 // pred_region
      _
    $region5: #{tpu_custom_call.1} parent=1 // pred_fallthru
      _
    %p12 = scmp.eq.s32.totalorder 0, 0
    // Predicated region
    $region6: #{tpu_custom_call.1} parent=1 // pred_check
      %p13 = pneg %p12
    $region7: #{tpu_custom_call.1} parent=1 // pred_check_branch
      %15 = sbr.rel (%p13) target = $region9
    $region8: #{tpu_custom_call.1} parent=1 // pred_region
      %vm16 = vcmask 286720
      %17 = vst.msk [vmem:[#allocation2] sm:$0x1] %vm16, 0.0
      %vm18 = vcmask 293888
      %19 = vst.msk [vmem:[#allocation4] sm:$0xff] %vm18, 0.0
      %20 = vst.msk [vmem:[#allocation4 + $0x8] sm:$0xff] %vm18, 0.0
      %21 = vst.msk [vmem:[#allocation4 + $0x10] sm:$0xff] %vm18, 0.0
      %22 = vst.msk [vmem:[#allocation4 + $0x18] sm:$0xff] %vm18, 0.0
      %vm23 = vcmask 289792
      %24 = vst.msk [vmem:[#allocation4 + $0x20] sm:$0xf] %vm23, 0.0
    $region9: #{tpu_custom_call.1} parent=1 // pred_fallthru
      _
    %v25 = vld [vmem:[%s0] sm:$0xff]
    %v26 = vld [vmem:[%s0 + $0x8] sm:$0xff]
    %v27 = vld [vmem:[%s0 + $0x10] sm:$0xff]
    %v28 = vld [vmem:[%s0 + $0x18] sm:$0xff]
    %v29 = vld [vmem:[%s0 + $0x20] sm:$0xff]
    %v30 = vld [vmem:[%s0 + $0x28] sm:$0xff]
    %v31 = vld [vmem:[%s0 + $0x30] sm:$0xff]
    %v32 = vld [vmem:[%s0 + $0x38] sm:$0xff]
    %v33 = vld [vmem:[%s0 + $0x40] sm:$0xff]
    %v34 = vld [vmem:[%s0 + $0x48] sm:$0xff]
    %v35 = vld [vmem:[%s0 + $0x50] sm:$0xff]
    %v36 = vld [vmem:[%s0 + $0x58] sm:$0xff]
    %v37 = vld [vmem:[%s0 + $0x60] sm:$0xff]
    %v38 = vld [vmem:[%s0 + $0x68] sm:$0xff]
    %v39 = vld [vmem:[%s0 + $0x70] sm:$0xff]
    %v40 = vld [vmem:[%s0 + $0x78] sm:$0xff]
    %v41 = vld [vmem:[%s0 + $0x80] sm:$0xff]
    %v42 = vld [vmem:[%s0 + $0x88] sm:$0xff]
    %v43 = vld [vmem:[%s0 + $0x90] sm:$0xff]
    %v44 = vld [vmem:[%s0 + $0x98] sm:$0xff]
    %v45 = vld [vmem:[%s0 + $0xa0] sm:$0xff]
    %v46 = vld [vmem:[%s0 + $0xa8] sm:$0xff]
    %v47 = vld [vmem:[%s0 + $0xb0] sm:$0xff]
    %v48 = vld [vmem:[%s0 + $0xb8] sm:$0xff]
    %v49 = vld [vmem:[%s0 + $0xc0] sm:$0xff]
    %v50 = vld [vmem:[%s0 + $0xc8] sm:$0xff]
    %v51 = vld [vmem:[%s0 + $0xd0] sm:$0xff]
    %v52 = vld [vmem:[%s0 + $0xd8] sm:$0xff]
    %v53 = vld [vmem:[%s0 + $0xe0] sm:$0xff]
    %v54 = vld [vmem:[%s0 + $0xe8] sm:$0xff]
    %v55 = vld [vmem:[%s0 + $0xf0] sm:$0xff]
    %v56 = vld [vmem:[%s0 + $0xf8] sm:$0xff]
    %v57 = vld [vmem:[%s0 + $0x100] sm:$0xff]
    %v58 = vld [vmem:[%s0 + $0x108] sm:$0xff]
    %v59 = vld [vmem:[%s0 + $0x110] sm:$0xff]
    %v60 = vld [vmem:[%s0 + $0x118] sm:$0xff]
    %v61 = vld [vmem:[%s0 + $0x120] sm:$0xff]
    %v62 = vld [vmem:[%s0 + $0x128] sm:$0xff]
    %v63 = vld [vmem:[%s0 + $0x130] sm:$0xff]
    %v64 = vld [vmem:[%s0 + $0x138] sm:$0xff]
    %v65 = vld [vmem:[%s0 + $0x140] sm:$0xff]
    %v66 = vld [vmem:[%s0 + $0x148] sm:$0xff]
    %v67 = vld [vmem:[%s0 + $0x150] sm:$0xff]
    %v68 = vld [vmem:[%s0 + $0x158] sm:$0xff]
    %v69 = vld [vmem:[%s0 + $0x160] sm:$0xff]
    %v70 = vld [vmem:[%s0 + $0x168] sm:$0xff]
    %v71 = vld [vmem:[%s0 + $0x170] sm:$0xff]
    %v72 = vld [vmem:[%s0 + $0x178] sm:$0xff]
    %v73 = vld [vmem:[%s0 + $0x180] sm:$0xff]
    %v74 = vld [vmem:[%s0 + $0x188] sm:$0xff]
    %v75 = vld [vmem:[%s0 + $0x190] sm:$0xff]
    %v76 = vld [vmem:[%s0 + $0x198] sm:$0xff]
    %v77 = vld [vmem:[%s0 + $0x1a0] sm:$0xff]
    %v78 = vld [vmem:[%s0 + $0x1a8] sm:$0xff]
    %v79 = vld [vmem:[%s0 + $0x1b0] sm:$0xff]
    %v80 = vld [vmem:[%s0 + $0x1b8] sm:$0xff]
    %v81 = vld [vmem:[%s0 + $0x1c0] sm:$0xff]
    %v82 = vld [vmem:[%s0 + $0x1c8] sm:$0xff]
    %v83 = vld [vmem:[%s0 + $0x1d0] sm:$0xff]
    %v84 = vld [vmem:[%s0 + $0x1d8] sm:$0xff]
    %v85 = vld [vmem:[%s0 + $0x1e0] sm:$0xff]
    %v86 = vld [vmem:[%s0 + $0x1e8] sm:$0xff]
    %v87 = vld [vmem:[%s0 + $0x1f0] sm:$0xff]
    %v88 = vld [vmem:[%s0 + $0x1f8] sm:$0xff]
    %v89 = vld [vmem:[#allocation2] sm:$0x1]
    %vm90 = vcmask 293888
    %v91 = vsel %vm90, %v25, 0.0
    %v92 = vsel %vm90, %v26, 0.0
    %v93 = vadd.f32 %v91, %v92
    %v94 = vsel %vm90, %v27, 0.0
    %v95 = vadd.f32 %v93, %v94
    %v96 = vsel %vm90, %v28, 0.0
    %v97 = vadd.f32 %v95, %v96
    %v98 = vsel %vm90, %v29, 0.0
    %v99 = vadd.f32 %v97, %v98
    %v100 = vsel %vm90, %v30, 0.0
    %v101 = vadd.f32 %v99, %v100
    %v102 = vsel %vm90, %v31, 0.0
    %v103 = vadd.f32 %v101, %v102
    %v104 = vsel %vm90, %v32, 0.0
    %v105 = vadd.f32 %v103, %v104
    %v106 = vsel %vm90, %v33, 0.0
    %v107 = vadd.f32 %v105, %v106
    %v108 = vsel %vm90, %v34, 0.0
    %v109 = vadd.f32 %v107, %v108
    %v110 = vsel %vm90, %v35, 0.0
    %v111 = vadd.f32 %v109, %v110
    %v112 = vsel %vm90, %v36, 0.0
    %v113 = vadd.f32 %v111, %v112
    %v114 = vsel %vm90, %v37, 0.0
    %v115 = vadd.f32 %v113, %v114
    %v116 = vsel %vm90, %v38, 0.0
    %v117 = vadd.f32 %v115, %v116
    %v118 = vsel %vm90, %v39, 0.0
    %v119 = vadd.f32 %v117, %v118
    %v120 = vsel %vm90, %v40, 0.0
    %v121 = vadd.f32 %v119, %v120
    %v122 = vsel %vm90, %v41, 0.0
    %v123 = vadd.f32 %v121, %v122
    %v124 = vsel %vm90, %v42, 0.0
    %v125 = vadd.f32 %v123, %v124
    %v126 = vsel %vm90, %v43, 0.0
    %v127 = vadd.f32 %v125, %v126
    %v128 = vsel %vm90, %v44, 0.0
    %v129 = vadd.f32 %v127, %v128
    %v130 = vsel %vm90, %v45, 0.0
    %v131 = vadd.f32 %v129, %v130
    %v132 = vsel %vm90, %v46, 0.0
    %v133 = vadd.f32 %v131, %v132
    %v134 = vsel %vm90, %v47, 0.0
    %v135 = vadd.f32 %v133, %v134
    %v136 = vsel %vm90, %v48, 0.0
    %v137 = vadd.f32 %v135, %v136
    %v138 = vsel %vm90, %v49, 0.0
    %v139 = vadd.f32 %v137, %v138
    %v140 = vsel %vm90, %v50, 0.0
    %v141 = vadd.f32 %v139, %v140
    %v142 = vsel %vm90, %v51, 0.0
    %v143 = vadd.f32 %v141, %v142
    %v144 = vsel %vm90, %v52, 0.0
    %v145 = vadd.f32 %v143, %v144
    %v146 = vsel %vm90, %v53, 0.0
    %v147 = vadd.f32 %v145, %v146
    %v148 = vsel %vm90, %v54, 0.0
    %v149 = vadd.f32 %v147, %v148
    %v150 = vsel %vm90, %v55, 0.0
    %v151 = vadd.f32 %v149, %v150
    %v152 = vsel %vm90, %v56, 0.0
    %v153 = vadd.f32 %v151, %v152
    %v154 = vsel %vm90, %v57, 0.0
    %v155 = vadd.f32 %v153, %v154
    %v156 = vsel %vm90, %v58, 0.0
    %v157 = vadd.f32 %v155, %v156
    %v158 = vsel %vm90, %v59, 0.0
    %v159 = vadd.f32 %v157, %v158
    %v160 = vsel %vm90, %v60, 0.0
    %v161 = vadd.f32 %v159, %v160
    %v162 = vsel %vm90, %v61, 0.0
    %v163 = vadd.f32 %v161, %v162
    %v164 = vsel %vm90, %v62, 0.0
    %v165 = vadd.f32 %v163, %v164
    %v166 = vsel %vm90, %v63, 0.0
    %v167 = vadd.f32 %v165, %v166
    %v168 = vsel %vm90, %v64, 0.0
    %v169 = vadd.f32 %v167, %v168
    %v170 = vsel %vm90, %v65, 0.0
    %v171 = vadd.f32 %v169, %v170
    %v172 = vsel %vm90, %v66, 0.0
    %v173 = vadd.f32 %v171, %v172
    %v174 = vsel %vm90, %v67, 0.0
    %v175 = vadd.f32 %v173, %v174
    %v176 = vsel %vm90, %v68, 0.0
    %v177 = vadd.f32 %v175, %v176
    %v178 = vsel %vm90, %v69, 0.0
    %v179 = vadd.f32 %v177, %v178
    %v180 = vsel %vm90, %v70, 0.0
    %v181 = vadd.f32 %v179, %v180
    %v182 = vsel %vm90, %v71, 0.0
    %v183 = vadd.f32 %v181, %v182
    %v184 = vsel %vm90, %v72, 0.0
    %v185 = vadd.f32 %v183, %v184
    %v186 = vsel %vm90, %v73, 0.0
    %v187 = vadd.f32 %v185, %v186
    %v188 = vsel %vm90, %v74, 0.0
    %v189 = vadd.f32 %v187, %v188
    %v190 = vsel %vm90, %v75, 0.0
    %v191 = vadd.f32 %v189, %v190
    %v192 = vsel %vm90, %v76, 0.0
    %v193 = vadd.f32 %v191, %v192
    %v194 = vsel %vm90, %v77, 0.0
    %v195 = vadd.f32 %v193, %v194
    %v196 = vsel %vm90, %v78, 0.0
    %v197 = vadd.f32 %v195, %v196
    %v198 = vsel %vm90, %v79, 0.0
    %v199 = vadd.f32 %v197, %v198
    %v200 = vsel %vm90, %v80, 0.0
    %v201 = vadd.f32 %v199, %v200
    %v202 = vsel %vm90, %v81, 0.0
    %v203 = vadd.f32 %v201, %v202
    %v204 = vsel %vm90, %v82, 0.0
    %v205 = vadd.f32 %v203, %v204
    %v206 = vsel %vm90, %v83, 0.0
    %v207 = vadd.f32 %v205, %v206
    %v208 = vsel %vm90, %v84, 0.0
    %v209 = vadd.f32 %v207, %v208
    %v210 = vsel %vm90, %v85, 0.0
    %v211 = vadd.f32 %v209, %v210
    %v212 = vsel %vm90, %v86, 0.0
    %v213 = vadd.f32 %v211, %v212
    %v214 = vsel %vm90, %v87, 0.0
    %v215 = vadd.f32 %v213, %v214
    %v216 = vsel %vm90, %v88, 0.0
    %v217 = vadd.f32 %v215, %v216
    %v218 = vrot.slane %v217, 4
    %v219 = vadd.f32 %v217, %v218
    %v220 = vrot.slane %v219, 2
    %v221 = vadd.f32 %v219, %v220
    %v222 = vrot.slane %v221, 1
    %v223 = vadd.f32 %v221, %v222
    %v224 = vadd.f32 %v89, %v223
    %vm225 = vcmask 286720
    %226 = vst.msk [vmem:[#allocation2] sm:$0x1] %vm225, %v224
    %v227 = vld [vmem:[#allocation4] sm:$0xff]
    %v228 = vld [vmem:[#allocation4 + $0x8] sm:$0xff]
    %v229 = vld [vmem:[#allocation4 + $0x10] sm:$0xff]
    %v230 = vld [vmem:[#allocation4 + $0x18] sm:$0xff]
    %v231 = vld [vmem:[#allocation4 + $0x20] sm:$0xf]
    %232 = vxpose.xlu0.b32.start [1/16] %v25, 128
    %233 = vxpose.xlu0.b32.cont [2/16] %v26, 128
    %234 = vxpose.xlu0.b32.cont [3/16] %v27, 128
    %235 = vxpose.xlu0.b32.cont [4/16] %v28, 128
    %236 = vxpose.xlu0.b32.cont [5/16] %v29, 128
    %237 = vxpose.xlu0.b32.cont [6/16] %v30, 128
    %238 = vxpose.xlu0.b32.cont [7/16] %v31, 128
    %239 = vxpose.xlu0.b32.cont [8/16] %v32, 128
    %240 = vxpose.xlu0.b32.cont [9/16] %v33, 128
    %241 = vxpose.xlu0.b32.cont [10/16] %v34, 128
    %242 = vxpose.xlu0.b32.cont [11/16] %v35, 128
    %243 = vxpose.xlu0.b32.cont [12/16] %v36, 128
    %244 = vxpose.xlu0.b32.cont [13/16] %v37, 128
    %245 = vxpose.xlu0.b32.cont [14/16] %v38, 128
    %246 = vxpose.xlu0.b32.cont [15/16] %v39, 128
    %247 = vxpose.xlu0.b32.end [16/16] %v40, 128
    %v248 = vpop.trf.xlu0
    %v249 = vpop.trf.xlu0
    %v250 = vpop.trf.xlu0
    %v251 = vpop.trf.xlu0
    %v252 = vpop.trf.xlu0
    %v253 = vpop.trf.xlu0
    %v254 = vpop.trf.xlu0
    %v255 = vpop.trf.xlu0
    %v256 = vpop.trf.xlu0
    %v257 = vpop.trf.xlu0
    %v258 = vpop.trf.xlu0
    %v259 = vpop.trf.xlu0
    %v260 = vpop.trf.xlu0
    %v261 = vpop.trf.xlu0
    %v262 = vpop.trf.xlu0
    %v263 = vpop.trf.xlu0
    %264 = vxpose.xlu0.b32.start [1/16] %v41, 128
    %265 = vxpose.xlu0.b32.cont [2/16] %v42, 128
    %266 = vxpose.xlu0.b32.cont [3/16] %v43, 128
    %267 = vxpose.xlu0.b32.cont [4/16] %v44, 128
    %268 = vxpose.xlu0.b32.cont [5/16] %v45, 128
    %269 = vxpose.xlu0.b32.cont [6/16] %v46, 128
    %270 = vxpose.xlu0.b32.cont [7/16] %v47, 128
    %271 = vxpose.xlu0.b32.cont [8/16] %v48, 128
    %272 = vxpose.xlu0.b32.cont [9/16] %v49, 128
    %273 = vxpose.xlu0.b32.cont [10/16] %v50, 128
    %274 = vxpose.xlu0.b32.cont [11/16] %v51, 128
    %275 = vxpose.xlu0.b32.cont [12/16] %v52, 128
    %276 = vxpose.xlu0.b32.cont [13/16] %v53, 128
    %277 = vxpose.xlu0.b32.cont [14/16] %v54, 128
    %278 = vxpose.xlu0.b32.cont [15/16] %v55, 128
    %279 = vxpose.xlu0.b32.end [16/16] %v56, 128
    %v280 = vpop.trf.xlu0
    %v281 = vpop.trf.xlu0
    %v282 = vpop.trf.xlu0
    %v283 = vpop.trf.xlu0
    %v284 = vpop.trf.xlu0
    %v285 = vpop.trf.xlu0
    %v286 = vpop.trf.xlu0
    %v287 = vpop.trf.xlu0
    %v288 = vpop.trf.xlu0
    %v289 = vpop.trf.xlu0
    %v290 = vpop.trf.xlu0
    %v291 = vpop.trf.xlu0
    %v292 = vpop.trf.xlu0
    %v293 = vpop.trf.xlu0
    %v294 = vpop.trf.xlu0
    %v295 = vpop.trf.xlu0
    %296 = vxpose.xlu0.b32.start [1/16] %v57, 128
    %297 = vxpose.xlu0.b32.cont [2/16] %v58, 128
    %298 = vxpose.xlu0.b32.cont [3/16] %v59, 128
    %299 = vxpose.xlu0.b32.cont [4/16] %v60, 128
    %300 = vxpose.xlu0.b32.cont [5/16] %v61, 128
    %301 = vxpose.xlu0.b32.cont [6/16] %v62, 128
    %302 = vxpose.xlu0.b32.cont [7/16] %v63, 128
    %303 = vxpose.xlu0.b32.cont [8/16] %v64, 128
    %304 = vxpose.xlu0.b32.cont [9/16] %v65, 128
    %305 = vxpose.xlu0.b32.cont [10/16] %v66, 128
    %306 = vxpose.xlu0.b32.cont [11/16] %v67, 128
    %307 = vxpose.xlu0.b32.cont [12/16] %v68, 128
    %308 = vxpose.xlu0.b32.cont [13/16] %v69, 128
    %309 = vxpose.xlu0.b32.cont [14/16] %v70, 128
    %310 = vxpose.xlu0.b32.cont [15/16] %v71, 128
    %311 = vxpose.xlu0.b32.end [16/16] %v72, 128
    %v312 = vpop.trf.xlu0
    %v313 = vpop.trf.xlu0
    %v314 = vpop.trf.xlu0
    %v315 = vpop.trf.xlu0
    %v316 = vpop.trf.xlu0
    %v317 = vpop.trf.xlu0
    %v318 = vpop.trf.xlu0
    %v319 = vpop.trf.xlu0
    %v320 = vpop.trf.xlu0
    %v321 = vpop.trf.xlu0
    %v322 = vpop.trf.xlu0
    %v323 = vpop.trf.xlu0
    %v324 = vpop.trf.xlu0
    %v325 = vpop.trf.xlu0
    %v326 = vpop.trf.xlu0
    %v327 = vpop.trf.xlu0
    %328 = vxpose.xlu0.b32.start [1/16] %v73, 128
    %329 = vxpose.xlu0.b32.cont [2/16] %v74, 128
    %330 = vxpose.xlu0.b32.cont [3/16] %v75, 128
    %331 = vxpose.xlu0.b32.cont [4/16] %v76, 128
    %332 = vxpose.xlu0.b32.cont [5/16] %v77, 128
    %333 = vxpose.xlu0.b32.cont [6/16] %v78, 128
    %334 = vxpose.xlu0.b32.cont [7/16] %v79, 128
    %335 = vxpose.xlu0.b32.cont [8/16] %v80, 128
    %336 = vxpose.xlu0.b32.cont [9/16] %v81, 128
    %337 = vxpose.xlu0.b32.cont [10/16] %v82, 128
    %338 = vxpose.xlu0.b32.cont [11/16] %v83, 128
    %339 = vxpose.xlu0.b32.cont [12/16] %v84, 128
    %340 = vxpose.xlu0.b32.cont [13/16] %v85, 128
    %341 = vxpose.xlu0.b32.cont [14/16] %v86, 128
    %342 = vxpose.xlu0.b32.cont [15/16] %v87, 128
    %343 = vxpose.xlu0.b32.end [16/16] %v88, 128
    %v344 = vpop.trf.xlu0
    %v345 = vpop.trf.xlu0
    %v346 = vpop.trf.xlu0
    %v347 = vpop.trf.xlu0
    %v348 = vpop.trf.xlu0
    %v349 = vpop.trf.xlu0
    %v350 = vpop.trf.xlu0
    %v351 = vpop.trf.xlu0
    %v352 = vpop.trf.xlu0
    %v353 = vpop.trf.xlu0
    %v354 = vpop.trf.xlu0
    %v355 = vpop.trf.xlu0
    %v356 = vpop.trf.xlu0
    %v357 = vpop.trf.xlu0
    %v358 = vpop.trf.xlu0
    %v359 = vpop.trf.xlu0
    %360 = vmatprep.subr.mxu0 0.0
    %361 = vmatpush1.msra.mxu0 %v40
    %362 = vmatprep.subr.mxu0 0.0
    %363 = vmatpush1.msra.mxu0 %v39
    %364 = vmatprep.subr.mxu0 0.0
    %365 = vmatpush1.msra.mxu0 %v38
    %366 = vmatprep.subr.mxu0 0.0
    %367 = vmatpush1.msra.mxu0 %v37
    %368 = vmatprep.subr.mxu0 0.0
    %369 = vmatpush1.msra.mxu0 %v36
    %370 = vmatprep.subr.mxu0 0.0
    %371 = vmatpush1.msra.mxu0 %v35
    %372 = vmatprep.subr.mxu0 0.0
    %373 = vmatpush1.msra.mxu0 %v34
    %374 = vmatprep.subr.mxu0 0.0
    %375 = vmatpush1.msra.mxu0 %v33
    %376 = vmatprep.subr.mxu0 0.0
    %377 = vmatpush1.msra.mxu0 %v32
    %378 = vmatprep.subr.mxu0 0.0
    %379 = vmatpush1.msra.mxu0 %v31
    %380 = vmatprep.subr.mxu0 0.0
    %381 = vmatpush1.msra.mxu0 %v30
    %382 = vmatprep.subr.mxu0 0.0
    %383 = vmatpush1.msra.mxu0 %v29
    %384 = vmatprep.subr.mxu0 0.0
    %385 = vmatpush1.msra.mxu0 %v28
    %386 = vmatprep.subr.mxu0 0.0
    %387 = vmatpush1.msra.mxu0 %v27
    %388 = vmatprep.subr.mxu0 0.0
    %389 = vmatpush1.msra.mxu0 %v26
    %390 = vmatprep.subr.mxu0 0.0
    %391 = vmatpush1.msra.mxu0 %v25
    %392 = vmatprep.subr.mxu0 0.0
    %393 = vmatpush2.msra.mxu0 %v56
    %394 = vmatprep.subr.mxu0 0.0
    %395 = vmatpush2.msra.mxu0 %v55
    %396 = vmatprep.subr.mxu0 0.0
    %397 = vmatpush2.msra.mxu0 %v54
    %398 = vmatprep.subr.mxu0 0.0
    %399 = vmatpush2.msra.mxu0 %v53
    %400 = vmatprep.subr.mxu0 0.0
    %401 = vmatpush2.msra.mxu0 %v52
    %402 = vmatprep.subr.mxu0 0.0
    %403 = vmatpush2.msra.mxu0 %v51
    %404 = vmatprep.subr.mxu0 0.0
    %405 = vmatpush2.msra.mxu0 %v50
    %406 = vmatprep.subr.mxu0 0.0
    %407 = vmatpush2.msra.mxu0 %v49
    %408 = vmatprep.subr.mxu0 0.0
    %409 = vmatpush2.msra.mxu0 %v48
    %410 = vmatprep.subr.mxu0 0.0
    %411 = vmatpush2.msra.mxu0 %v47
    %412 = vmatprep.subr.mxu0 0.0
    %413 = vmatpush2.msra.mxu0 %v46
    %414 = vmatprep.subr.mxu0 0.0
    %415 = vmatpush2.msra.mxu0 %v45
    %416 = vmatprep.subr.mxu0 0.0
    %417 = vmatpush2.msra.mxu0 %v44
    %418 = vmatprep.subr.mxu0 0.0
    %419 = vmatpush2.msra.mxu0 %v43
    %420 = vmatprep.subr.mxu0 0.0
    %421 = vmatpush2.msra.mxu0 %v42
    %422 = vmatprep.subr.mxu0 0.0
    %423 = vmatpush2.msra.mxu0 %v41
    %424 = vmatprep.mubr.f32.mxu0 %v280
    %425 = vmatmul.mubr.f32.gmra.mxu0 %v248
    %v426 = vpop.f32.mrf.mxu0
    %v427 = vadd.f32 0.0, %v426
    %v428 = vpop.f32.mrf.mxu0
    %429 = vmatprep.mubr.f32.mxu0 %v281
    %430 = vmatmul.mubr.f32.gmra.mxu0 %v249
    %v431 = vpop.f32.mrf.mxu0
    %v432 = vadd.f32 0.0, %v431
    %v433 = vpop.f32.mrf.mxu0
    %434 = vmatprep.mubr.f32.mxu0 %v282
    %435 = vmatmul.mubr.f32.gmra.mxu0 %v250
    %v436 = vpop.f32.mrf.mxu0
    %v437 = vadd.f32 0.0, %v436
    %v438 = vpop.f32.mrf.mxu0
    %439 = vmatprep.mubr.f32.mxu0 %v283
    %440 = vmatmul.mubr.f32.gmra.mxu0 %v251
    %v441 = vpop.f32.mrf.mxu0
    %v442 = vadd.f32 0.0, %v441
    %v443 = vpop.f32.mrf.mxu0
    %444 = vmatprep.mubr.f32.mxu0 %v284
    %445 = vmatmul.mubr.f32.gmra.mxu0 %v252
    %v446 = vpop.f32.mrf.mxu0
    %v447 = vadd.f32 0.0, %v446
    %v448 = vpop.f32.mrf.mxu0
    %449 = vdwg.mxu0
    %450 = vmatprep.subr.mxu0 0.0
    %451 = vmatpush1.msra.mxu0 %v72
    %452 = vmatprep.subr.mxu0 0.0
    %453 = vmatpush1.msra.mxu0 %v71
    %454 = vmatprep.subr.mxu0 0.0
    %455 = vmatpush1.msra.mxu0 %v70
    %456 = vmatprep.subr.mxu0 0.0
    %457 = vmatpush1.msra.mxu0 %v69
    %458 = vmatprep.subr.mxu0 0.0
    %459 = vmatpush1.msra.mxu0 %v68
    %460 = vmatprep.subr.mxu0 0.0
    %461 = vmatpush1.msra.mxu0 %v67
    %462 = vmatprep.subr.mxu0 0.0
    %463 = vmatpush1.msra.mxu0 %v66
    %464 = vmatprep.subr.mxu0 0.0
    %465 = vmatpush1.msra.mxu0 %v65
    %466 = vmatprep.subr.mxu0 0.0
    %467 = vmatpush1.msra.mxu0 %v64
    %468 = vmatprep.subr.mxu0 0.0
    %469 = vmatpush1.msra.mxu0 %v63
    %470 = vmatprep.subr.mxu0 0.0
    %471 = vmatpush1.msra.mxu0 %v62
    %472 = vmatprep.subr.mxu0 0.0
    %473 = vmatpush1.msra.mxu0 %v61
    %474 = vmatprep.subr.mxu0 0.0
    %475 = vmatpush1.msra.mxu0 %v60
    %476 = vmatprep.subr.mxu0 0.0
    %477 = vmatpush1.msra.mxu0 %v59
    %478 = vmatprep.subr.mxu0 0.0
    %479 = vmatpush1.msra.mxu0 %v58
    %480 = vmatprep.subr.mxu0 0.0
    %481 = vmatpush1.msra.mxu0 %v57
    %482 = vmatprep.subr.mxu0 0.0
    %483 = vmatpush2.msra.mxu0 %v88
    %484 = vmatprep.subr.mxu0 0.0
    %485 = vmatpush2.msra.mxu0 %v87
    %486 = vmatprep.subr.mxu0 0.0
    %487 = vmatpush2.msra.mxu0 %v86
    %488 = vmatprep.subr.mxu0 0.0
    %489 = vmatpush2.msra.mxu0 %v85
    %490 = vmatprep.subr.mxu0 0.0
    %491 = vmatpush2.msra.mxu0 %v84
    %492 = vmatprep.subr.mxu0 0.0
    %493 = vmatpush2.msra.mxu0 %v83
    %494 = vmatprep.subr.mxu0 0.0
    %495 = vmatpush2.msra.mxu0 %v82
    %496 = vmatprep.subr.mxu0 0.0
    %497 = vmatpush2.msra.mxu0 %v81
    %498 = vmatprep.subr.mxu0 0.0
    %499 = vmatpush2.msra.mxu0 %v80
    %500 = vmatprep.subr.mxu0 0.0
    %501 = vmatpush2.msra.mxu0 %v79
    %502 = vmatprep.subr.mxu0 0.0
    %503 = vmatpush2.msra.mxu0 %v78
    %504 = vmatprep.subr.mxu0 0.0
    %505 = vmatpush2.msra.mxu0 %v77
    %506 = vmatprep.subr.mxu0 0.0
    %507 = vmatpush2.msra.mxu0 %v76
    %508 = vmatprep.subr.mxu0 0.0
    %509 = vmatpush2.msra.mxu0 %v75
    %510 = vmatprep.subr.mxu0 0.0
    %511 = vmatpush2.msra.mxu0 %v74
    %512 = vmatprep.subr.mxu0 0.0
    %513 = vmatpush2.msra.mxu0 %v73
    %514 = vmatprep.mubr.f32.mxu0 %v344
    %515 = vmatmul.mubr.f32.gmra.mxu0 %v312
    %v516 = vpop.f32.mrf.mxu0
    %v517 = vadd.f32 %v427, %v516
    %v518 = vpop.f32.mrf.mxu0
    %519 = vmatprep.mubr.f32.mxu0 %v345
    %520 = vmatmul.mubr.f32.gmra.mxu0 %v313
    %v521 = vpop.f32.mrf.mxu0
    %v522 = vadd.f32 %v432, %v521
    %v523 = vpop.f32.mrf.mxu0
    %524 = vmatprep.mubr.f32.mxu0 %v346
    %525 = vmatmul.mubr.f32.gmra.mxu0 %v314
    %v526 = vpop.f32.mrf.mxu0
    %v527 = vadd.f32 %v437, %v526
    %v528 = vpop.f32.mrf.mxu0
    %529 = vmatprep.mubr.f32.mxu0 %v347
    %530 = vmatmul.mubr.f32.gmra.mxu0 %v315
    %v531 = vpop.f32.mrf.mxu0
    %v532 = vadd.f32 %v442, %v531
    %v533 = vpop.f32.mrf.mxu0
    %534 = vmatprep.mubr.f32.mxu0 %v348
    %535 = vmatmul.mubr.f32.gmra.mxu0 %v316
    %v536 = vpop.f32.mrf.mxu0
    %v537 = vadd.f32 %v447, %v536
    %v538 = vpop.f32.mrf.mxu0
    %539 = vdwg.mxu0
    %v540 = vadd.f32 %v227, %v517
    %v541 = vadd.f32 %v228, %v522
    %v542 = vadd.f32 %v229, %v527
    %v543 = vadd.f32 %v230, %v532
    %v544 = vadd.f32 %v231, %v537
    %545 = vst.msk [vmem:[#allocation4] sm:$0xff] %vm90, %v540
    %546 = vst.msk [vmem:[#allocation4 + $0x8] sm:$0xff] %vm90, %v541
    %547 = vst.msk [vmem:[#allocation4 + $0x10] sm:$0xff] %vm90, %v542
    %548 = vst.msk [vmem:[#allocation4 + $0x18] sm:$0xff] %vm90, %v543
    %vm549 = vcmask 289792
    %550 = vst.msk [vmem:[#allocation4 + $0x20] sm:$0xf] %vm549, %v544
    // Predicated region
    $region10: #{tpu_custom_call.1} parent=1 // pred_check
      _
    $region11: #{tpu_custom_call.1} parent=1 // pred_check_branch
      %552 = sbr.rel (0) target = $region13
    $region12: #{tpu_custom_call.1} parent=1 // pred_region
      %s554 = ssub.s32 16, 16
      %555 = vsyncadd [#allocation3], %s554
      %s557 = sshll.u32 [#allocation2], 4
      %s558 = int_to_ptr.vmem [resolvable:$true] %s557
      %560 = dma.vmem_to_hbm [thread:$0]  %s558, 16, %s1, [#allocation3]
    $region13: #{tpu_custom_call.1} parent=1 // pred_fallthru
      _
    // Predicated region
    $region14: #{tpu_custom_call.1} parent=1 // pred_check
      _
    $region15: #{tpu_custom_call.1} parent=1 // pred_check_branch
      %562 = sbr.rel (0) target = $region17
    $region16: #{tpu_custom_call.1} parent=1 // pred_region
      %s564 = ssub.s32 640, 640
      %565 = vsyncadd [#allocation5], %s564
      %s566 = sshll.u32 [#allocation4], 4
      %s567 = int_to_ptr.vmem [resolvable:$true] %s566
      %572 = dma.vmem_to_hbm [thread:$0]  %s567, 640, %s2, [#allocation5], 128, 128, 8
    $region17: #{tpu_custom_call.1} parent=1 // pred_fallthru
      _
    // Predicated region
    $region18: #{tpu_custom_call.1} parent=1 // pred_check
      _
    $region19: #{tpu_custom_call.1} parent=1 // pred_check_branch
      %574 = sbr.rel (0) target = $region21
    $region20: #{tpu_custom_call.1} parent=1 // pred_region
      %575 = dma.done [#allocation3], 16
    $region21: #{tpu_custom_call.1} parent=1 // pred_fallthru
      _
    // Predicated region
    $region22: #{tpu_custom_call.1} parent=1 // pred_check
      _
    $region23: #{tpu_custom_call.1} parent=1 // pred_check_branch
      %577 = sbr.rel (0) target = $region25
    $region24: #{tpu_custom_call.1} parent=1 // pred_region
      %578 = dma.done [#allocation5], 640
    $region25: #{tpu_custom_call.1} parent=1 // pred_fallthru
      _
    %579 = vsyncpa [#allocation3], 1
    %580 = vsyncpa [#allocation5], 1

</llo_original>
